<compile_context>
chip_gen: v6e
topology: v6e:2x2x1
jax: 0.10.0
libtpu: 0.0.40
codegen_flags: <defaults>
</compile_context>

<pallas_src>
import numpy as np
import jax
import jax.numpy as jnp
from jax import lax
from jax.experimental import pallas as pl
from jax.experimental.pallas import tpu as pltpu


def _fold_tconv_weight(w_tconv, w_in):
    """Fold ConvTranspose2d(k=3, s=2, p=1, op=1) weights into 2 banded matrices.

    Output pixel (2i+a, 2j+b) receives taps only from input pixels (i+dy, j+dx),
    dy,dx in {0,1}, through kernel taps ky=KTAP[a][dy], kx=KTAP[b][dx] (-1 = no tap).
    The 2x upsample, tap selection and unroll over output columns are baked into two
    matrices W_dy of shape (W*Cin, 2*2W*Cout):
        out_row[i, :] = x_row[i, :] @ W_0 + x_row[i+1, :] @ W_1   (+ bias)
    Taps that would read the right zero-pad column (j+dx == W) are simply dropped.

    w_tconv: (Cin, Cout, 3, 3)  PyTorch ConvTranspose2d weight layout.
    returns: (2, W*Cin, 2*2*W*Cout) float32.
    """
    c_in, c_out = int(w_tconv.shape[0]), int(w_tconv.shape[1])
    KTAP = ((1, -1), (2, 0))  # KTAP[out_parity][shift] -> kernel index (or -1)
    sel = np.zeros((2, w_in, 2, 2 * w_in, 3, 3), dtype=np.float32)
    for dy in (0, 1):
        for a in (0, 1):
            ky = KTAP[a][dy]
            if ky < 0:
                continue
            for dx in (0, 1):
                for b in (0, 1):
                    kx = KTAP[b][dx]
                    if kx < 0:
                        continue
                    for j in range(w_in):
                        jc = j + dx
                        if jc >= w_in:
                            continue  # right zero-pad column: contributes nothing
                        sel[dy, jc, a, 2 * j + b, ky, kx] = 1.0
    # Pure selection (each output entry is exactly one weight value); force full f32
    # precision so no double-rounding sneaks in before an optional bf16 cast later.
    wband = jnp.einsum("dpaqyx,ioyx->dpiaqo", jnp.asarray(sel),
                       w_tconv.astype(jnp.float32),
                       precision=lax.Precision.HIGHEST)
    return wband.reshape(2, w_in * c_in, 2 * 2 * w_in * c_out)


def _upscale_tconv_kernel(x_ref, w_ref, o_ref):
    """One fat MXU contraction: (N*H, 2*Kpad) @ (2*Kpad, 2*2W*Cout).

    x_ref : (N*H, 2*Kpad)  row r = (n, i); lanes [0:Kpad) = padded input row i
            (data | 1.0 bias lane | zeros), lanes [Kpad:2*Kpad) = padded input row i+1
            (the per-batch bottom zero-pad row supplies output_padding zeros).
    w_ref : (2*Kpad, Lout) folded band weights (dy=0 block stacked on dy=1 block);
            row Kpad//? -- the bias sits in the dy=0 block's constant-1 lane row.
    o_ref : (N*H, Lout)    lane-dense output slab, lane = a*(2W*Cout)+(2j+b)*Cout+co.
    """
    o_ref[...] = jnp.dot(x_ref[...], w_ref[...],
                         preferred_element_type=jnp.float32).astype(o_ref.dtype)


def upscaling_conv2d_forward(x_nchw, w_tconv, bias, *, operand_dtype=jnp.float32):
    """Forward pass of UpscalingConv2d (ConvTranspose2d k=3, s=2, p=1, op=1).

    x_nchw : (N, Cin, H, W) float32
    w_tconv: (Cin, Cout, 3, 3)   (PyTorch ConvTranspose2d weight layout)
    bias   : (Cout,)
    operand_dtype: jnp.float32 (exact, v5e-friendly) or jnp.bfloat16 (v6e/v7x MXU).
                   Accumulation and output stay float32 either way.
    returns: (N, Cout, 2H, 2W) NCHW, matching the PyTorch module.
    """
    n, c_in, h, w = x_nchw.shape
    c_out = w_tconv.shape[1]
    wcin = w * c_in                    # lane-flattened input row width (64)
    l_out = 2 * 2 * w * c_out          # (row-parity, out-col, Cout) lanes (256)
    kpad = 128                         # pad K to a full lane tile
    assert wcin < kpad, "W*Cin must fit below the padded K width of 128"
    # TODO(synk): for larger W*Cin, bump kpad to the next multiple of 128 and/or tile W.

    # ---- wrapper-side layout plumbing only (no compute hoisted out of the kernel) ----
    # Padded per-row block: [ x(j,ci) lanes | 1.0 bias lane | zero lanes ], plus one
    # all-zero bottom row per batch element (supplies output_padding / dy=1 boundary).
    x_rows = jnp.transpose(x_nchw, (0, 2, 3, 1)).reshape(n, h, wcin).astype(jnp.float32)
    rb = jnp.concatenate([x_rows, jnp.ones((n, h, 1), jnp.float32)], axis=-1)
    rb = jnp.pad(rb, ((0, 0), (0, 1), (0, kpad - wcin - 1)))        # (n, h+1, kpad)
    # Fold the dy row shift into K: lanes [0:kpad)=row i, [kpad:2*kpad)=row i+1.
    xcat = jnp.concatenate([rb[:, 0:h, :], rb[:, 1:h + 1, :]], axis=-1)
    xcat = xcat.reshape(n * h, 2 * kpad).astype(operand_dtype)      # (N*H, 256)

    # Folded weights, bias in the constant-1 lane's row of the dy=0 block.
    wband = _fold_tconv_weight(w_tconv, w)                          # (2, wcin, l_out)
    bias_lane = jnp.tile(bias.astype(jnp.float32), 2 * 2 * w)[None, :]
    w0 = jnp.concatenate(
        [wband[0], bias_lane, jnp.zeros((kpad - wcin - 1, l_out), jnp.float32)], axis=0)
    w1 = jnp.concatenate(
        [wband[1], jnp.zeros((kpad - wcin, l_out), jnp.float32)], axis=0)
    wcat = jnp.concatenate([w0, w1], axis=0).astype(operand_dtype)  # (2*kpad, l_out)

    o = pl.pallas_call(
        _upscale_tconv_kernel,
        out_shape=jax.ShapeDtypeStruct((n * h, l_out), jnp.float32),
        grid_spec=pltpu.PrefetchScalarGridSpec(
            num_scalar_prefetch=0,
            grid=(1,),                                    # whole problem, one step
            in_specs=[
                pl.BlockSpec((n * h, 2 * kpad), lambda i: (0, 0)),
                pl.BlockSpec((2 * kpad, l_out), lambda i: (0, 0)),
            ],
            out_specs=pl.BlockSpec((n * h, l_out), lambda i: (0, 0)),
        ),
        compiler_params=pltpu.CompilerParams(
            dimension_semantics=("arbitrary",)),
    )(xcat, wcat)

    # Slab row r=(n,i), lane a*(2W*Cout)+(2j+b)*Cout+co == NHWC pixel (n, 2i+a, 2j+b, co)
    # -> single reshape + one NCHW transpose.
    out_nhwc = o.reshape(n, 2 * h, 2 * w, c_out)
    return jnp.transpose(out_nhwc, (0, 3, 1, 2))


def reference_forward(x_nchw, w_tconv, bias):
    """Pure-JAX ConvTranspose2d(k=3, s=2, p=1, output_padding=1) reference."""
    # transposed conv == conv of the 2x-dilated input with the spatially flipped,
    # IO-swapped kernel, padded (k-1-p, k-1-p+output_padding) = (1, 2) per side.
    w_flip = jnp.transpose(w_tconv[:, :, ::-1, ::-1], (1, 0, 2, 3))  # (Cout, Cin, 3, 3)
    y = lax.conv_general_dilated(
        x_nchw, w_flip, window_strides=(1, 1),
        padding=((1, 2), (1, 2)), lhs_dilation=(2, 2),
        dimension_numbers=("NCHW", "OIHW", "NCHW"),
        precision=lax.Precision.HIGHEST)
    return y + bias[None, :, None, None]


if __name__ == "__main__":
    # inplanes=4, n_classes=4; input spatial 16x16, batch 2 -> output (2, 4, 32, 32).
    N, Cin, H, W = 2, 4, 16, 16
    Cout = 4

    key = jax.random.PRNGKey(0)
    kx, kw, kb = jax.random.split(key, 3)

    x = jax.random.normal(kx, (N, Cin, H, W), dtype=jnp.float32)

    fan_in = Cin * 3 * 3
    bound = 1.0 / float(np.sqrt(fan_in))
    w_tconv = jax.random.uniform(kw, (Cin, Cout, 3, 3), jnp.float32,
                                 minval=-bound, maxval=bound)
    bias = jax.random.uniform(kb, (Cout,), jnp.float32,
                              minval=-bound, maxval=bound)

    # --- float32 operands: exact vs. the f32 reference (also the v5e default path) ---
    out = jax.block_until_ready(upscaling_conv2d_forward(x, w_tconv, bias))
    ref = reference_forward(x, w_tconv, bias)
    assert out.shape == (N, Cout, 2 * H, 2 * W), out.shape
    max_err = float(jnp.max(jnp.abs(out - ref)))
    assert jnp.allclose(out, ref, atol=1e-4, rtol=1e-4), f"f32 mismatch, max_err={max_err}"

    # --- bfloat16 operands (v6e/v7x MXU path), f32 accumulation/output.  Compare
    #     against a reference fed the same bf16-quantized operands. ---
    out_bf16 = jax.block_until_ready(
        upscaling_conv2d_forward(x, w_tconv, bias, operand_dtype=jnp.bfloat16))
    ref_bf16 = reference_forward(
        x.astype(jnp.bfloat16).astype(jnp.float32),
        w_tconv.astype(jnp.bfloat16).astype(jnp.float32),
        bias.astype(jnp.bfloat16).astype(jnp.float32))
    max_err_b = float(jnp.max(jnp.abs(out_bf16 - ref_bf16)))
    assert jnp.allclose(out_bf16, ref_bf16, atol=2e-3, rtol=2e-3), \
        f"bf16 mismatch, max_err={max_err_b}"

    print("KERNEL_OK")
</pallas_src>

<mosaic_0001>
module attributes {stable_mosaic.version = 11 : i64} {
  func.func @_upscale_tconv_kernel(%arg0: i32, %arg1: memref<32x256xf32, #tpu.memory_space<vmem>>, %arg2: memref<256x256xf32, #tpu.memory_space<vmem>>, %arg3: memref<32x256xf32, #tpu.memory_space<vmem>>) attributes {dimension_semantics = [#tpu.dimension_semantics<arbitrary>], iteration_bounds = array<i64: 1>, scalar_prefetch = 0 : i64, scratch_operands = 0 : i64, tpu.core_type = #tpu.core_type<tc>, window_params = [{pipeline_mode = #tpu.pipeline_mode<synchronous>, transform_indices = @transform_0, window_bounds = array<i64: 32, 256>}, {pipeline_mode = #tpu.pipeline_mode<synchronous>, transform_indices = @transform_1, window_bounds = array<i64: 256, 256>}, {pipeline_mode = #tpu.pipeline_mode<synchronous>, transform_indices = @transform_2, window_bounds = array<i64: 32, 256>}]} {
    %c0 = arith.constant 0 : index
    %c0_0 = arith.constant 0 : index
    %0 = vector.load %arg1[%c0, %c0_0] : memref<32x256xf32, #tpu.memory_space<vmem>>, vector<32x256xf32>
    %c0_1 = arith.constant 0 : index
    %c0_2 = arith.constant 0 : index
    %1 = vector.load %arg2[%c0_1, %c0_2] : memref<256x256xf32, #tpu.memory_space<vmem>>, vector<256x256xf32>
    %cst = arith.constant dense<0.000000e+00> : vector<32x256xf32>
    %2 = tpu.matmul %0, %1, %cst {dimension_numbers = #tpu.dot_dimension_numbers<[1], [0], [0], [1], [0, 0, 1, 1], [], []>} : vector<32x256xf32>, vector<256x256xf32>, vector<32x256xf32> -> vector<32x256xf32>
    %c0_3 = arith.constant 0 : index
    %c0_4 = arith.constant 0 : index
    %3 = vector.load %arg3[%c0_3, %c0_4] : memref<32x256xf32, #tpu.memory_space<vmem>>, vector<32x256xf32>
    tpu.vector_store %arg3[%c0_3, %c0_4], %2 {strides = array<i32>} : memref<32x256xf32, #tpu.memory_space<vmem>>, vector<32x256xf32>,
    return
  }
  func.func @transform_0(%arg0: i32) -> (i32, i32) {
    %c0_i32 = arith.constant 0 : i32
    %c0_i32_0 = arith.constant 0 : i32
    %c0_i32_1 = arith.constant 0 : i32
    return %c0_i32, %c0_i32_0 : i32, i32
  }
  func.func @transform_1(%arg0: i32) -> (i32, i32) {
    %c0_i32 = arith.constant 0 : i32
    %c0_i32_0 = arith.constant 0 : i32
    %c0_i32_1 = arith.constant 0 : i32
    return %c0_i32, %c0_i32_0 : i32, i32
  }
  func.func @transform_2(%arg0: i32) -> (i32, i32) {
    %c0_i32 = arith.constant 0 : i32
    %c0_i32_0 = arith.constant 0 : i32
    %c0_i32_1 = arith.constant 0 : i32
    return %c0_i32, %c0_i32_0 : i32, i32
  }
}

</mosaic_0001>

<llo_original>
// kernel: tpu_custom_call.1
$region0: #{tpu_custom_call.1}
  #allocation0 [shape = 'u32[]', space=smem, size = 0x4, offset = 0x4, fixed_abs, tag = 'smem constant byte address 0x4 - core index']
  #allocation1 [shape = 'u32[144,128]{1,0:T(1,128)}', space=vmem, size = 0x12000, scoped, tag = 'internal scratch']
  %s0 = inlined_call_operand.hbm [shape: f32[32,256], index: 0, kind: input, shape index: {}]
  %s1 = inlined_call_operand.hbm [shape: f32[256,256], index: 1, kind: input, shape index: {}]
  %s2 = inlined_call_operand.hbm [shape: f32[32,256], index: 2, kind: output, shape index: {}]
  %s3 = sld [smem:[#allocation0]]
  $region26: #{tpu_custom_call.1} parent=0
    _
  %s5 = ssub.s32 1, %s3
  %s6 = scalar_select 0, %s5, %s3
  $region1: #{tpu_custom_call.1} parent=0
    #allocation2 [shape = 'u8[32768]{0}', space=vmem, size = 0x8000, scoped, tag = 'input window, operand 0, single buffered']
    #allocation3 [shape = 's32[1]{0}', space=sflag, size = 0x4, scoped, tag = 'scoped memory for tpu_custom_call.1']
    #allocation4 [shape = 's32[1]{0}', space=sflag, size = 0x4, scoped, tag = 'scoped memory for tpu_custom_call.1']
    #allocation5 [shape = 'u8[262144]{0}', space=vmem, size = 0x40000, scoped, tag = 'input window, operand 1, single buffered']
    #allocation6 [shape = 's32[1]{0}', space=sflag, size = 0x4, scoped, tag = 'scoped memory for tpu_custom_call.1']
    #allocation7 [shape = 'u8[32768]{0}', space=vmem, size = 0x8000, scoped, tag = 'output window, operand 0, single buffered']
    %7 = vsyncpa [#allocation3], 0
    %8 = vsyncpa [#allocation6], 0
    %9 = vsyncpa [#allocation4], 0
    // Predicated region
    $region2: #{tpu_custom_call.1} parent=1 // pred_check
      _
    $region3: #{tpu_custom_call.1} parent=1 // pred_check_branch
      %11 = sbr.rel (0) target = $region5
    $region4: #{tpu_custom_call.1} parent=1 // pred_region
      %s13 = ssub.s32 1024, 1024
      %14 = vsyncadd [#allocation3], %s13
      %s15 = sshll.u32 [#allocation2], 4
      %s16 = int_to_ptr.vmem [resolvable:$true] %s15
      %21 = dma.hbm_to_vmem [thread:$0]  %s0, 1024, %s16, [#allocation3], 256, 256, 16
    $region5: #{tpu_custom_call.1} parent=1 // pred_fallthru
      _
    // Predicated region
    $region6: #{tpu_custom_call.1} parent=1 // pred_check
      _
    $region7: #{tpu_custom_call.1} parent=1 // pred_check_branch
      %23 = sbr.rel (0) target = $region9
    $region8: #{tpu_custom_call.1} parent=1 // pred_region
      %s25 = ssub.s32 8192, 8192
      %26 = vsyncadd [#allocation6], %s25
      %s27 = sshll.u32 [#allocation5], 4
      %s28 = int_to_ptr.vmem [resolvable:$true] %s27
      %33 = dma.hbm_to_vmem [thread:$0]  %s1, 8192, %s28, [#allocation6], 256, 256, 16
    $region9: #{tpu_custom_call.1} parent=1 // pred_fallthru
      _
    // Predicated region
    $region10: #{tpu_custom_call.1} parent=1 // pred_check
      _
    $region11: #{tpu_custom_call.1} parent=1 // pred_check_branch
      %35 = sbr.rel (0) target = $region13
    $region12: #{tpu_custom_call.1} parent=1 // pred_region
      %36 = dma.done [#allocation3], 1024
    $region13: #{tpu_custom_call.1} parent=1 // pred_fallthru
      _
    // Predicated region
    $region14: #{tpu_custom_call.1} parent=1 // pred_check
      _
    $region15: #{tpu_custom_call.1} parent=1 // pred_check_branch
      %38 = sbr.rel (0) target = $region17
    $region16: #{tpu_custom_call.1} parent=1 // pred_region
      %39 = dma.done [#allocation6], 8192
    $region17: #{tpu_custom_call.1} parent=1 // pred_fallthru
      _
    %v40 = vld [vmem:[#allocation2] sm:$0xff]
    %v41 = vld [vmem:[#allocation2 + $0x8] sm:$0xff]
    %v42 = vld [vmem:[#allocation2 + $0x10] sm:$0xff]
    %v43 = vld [vmem:[#allocation2 + $0x18] sm:$0xff]
    %v44 = vld [vmem:[#allocation2 + $0x20] sm:$0xff]
    %v45 = vld [vmem:[#allocation2 + $0x28] sm:$0xff]
    %v46 = vld [vmem:[#allocation2 + $0x30] sm:$0xff]
    %v47 = vld [vmem:[#allocation2 + $0x38] sm:$0xff]
    %v48 = vld [vmem:[#allocation5] sm:$0xff]
    %v49 = vld [vmem:[#allocation5 + $0x8] sm:$0xff]
    %v50 = vld [vmem:[#allocation5 + $0x10] sm:$0xff]
    %v51 = vld [vmem:[#allocation5 + $0x18] sm:$0xff]
    %v52 = vld [vmem:[#allocation5 + $0x20] sm:$0xff]
    %v53 = vld [vmem:[#allocation5 + $0x28] sm:$0xff]
    %v54 = vld [vmem:[#allocation5 + $0x30] sm:$0xff]
    %v55 = vld [vmem:[#allocation5 + $0x38] sm:$0xff]
    %v56 = vld [vmem:[#allocation5 + $0x40] sm:$0xff]
    %v57 = vld [vmem:[#allocation5 + $0x48] sm:$0xff]
    %v58 = vld [vmem:[#allocation5 + $0x50] sm:$0xff]
    %v59 = vld [vmem:[#allocation5 + $0x58] sm:$0xff]
    %v60 = vld [vmem:[#allocation5 + $0x60] sm:$0xff]
    %v61 = vld [vmem:[#allocation5 + $0x68] sm:$0xff]
    %v62 = vld [vmem:[#allocation5 + $0x70] sm:$0xff]
    %v63 = vld [vmem:[#allocation5 + $0x78] sm:$0xff]
    %v64 = vld [vmem:[#allocation5 + $0x80] sm:$0xff]
    %v65 = vld [vmem:[#allocation5 + $0x88] sm:$0xff]
    %v66 = vld [vmem:[#allocation5 + $0x90] sm:$0xff]
    %v67 = vld [vmem:[#allocation5 + $0x98] sm:$0xff]
    %v68 = vld [vmem:[#allocation5 + $0xa0] sm:$0xff]
    %v69 = vld [vmem:[#allocation5 + $0xa8] sm:$0xff]
    %v70 = vld [vmem:[#allocation5 + $0xb0] sm:$0xff]
    %v71 = vld [vmem:[#allocation5 + $0xb8] sm:$0xff]
    %v72 = vld [vmem:[#allocation5 + $0xc0] sm:$0xff]
    %v73 = vld [vmem:[#allocation5 + $0xc8] sm:$0xff]
    %v74 = vld [vmem:[#allocation5 + $0xd0] sm:$0xff]
    %v75 = vld [vmem:[#allocation5 + $0xd8] sm:$0xff]
    %v76 = vld [vmem:[#allocation5 + $0xe0] sm:$0xff]
    %v77 = vld [vmem:[#allocation5 + $0xe8] sm:$0xff]
    %v78 = vld [vmem:[#allocation5 + $0xf0] sm:$0xff]
    %v79 = vld [vmem:[#allocation5 + $0xf8] sm:$0xff]
    %v80 = vld [vmem:[#allocation5 + $0x100] sm:$0xff]
    %v81 = vld [vmem:[#allocation5 + $0x108] sm:$0xff]
    %v82 = vld [vmem:[#allocation5 + $0x110] sm:$0xff]
    %v83 = vld [vmem:[#allocation5 + $0x118] sm:$0xff]
    %v84 = vld [vmem:[#allocation5 + $0x120] sm:$0xff]
    %v85 = vld [vmem:[#allocation5 + $0x128] sm:$0xff]
    %v86 = vld [vmem:[#allocation5 + $0x130] sm:$0xff]
    %v87 = vld [vmem:[#allocation5 + $0x138] sm:$0xff]
    %v88 = vld [vmem:[#allocation5 + $0x140] sm:$0xff]
    %v89 = vld [vmem:[#allocation5 + $0x148] sm:$0xff]
    %v90 = vld [vmem:[#allocation5 + $0x150] sm:$0xff]
    %v91 = vld [vmem:[#allocation5 + $0x158] sm:$0xff]
    %v92 = vld [vmem:[#allocation5 + $0x160] sm:$0xff]
    %v93 = vld [vmem:[#allocation5 + $0x168] sm:$0xff]
    %v94 = vld [vmem:[#allocation5 + $0x170] sm:$0xff]
    %v95 = vld [vmem:[#allocation5 + $0x178] sm:$0xff]
    %v96 = vld [vmem:[#allocation5 + $0x180] sm:$0xff]
    %v97 = vld [vmem:[#allocation5 + $0x188] sm:$0xff]
    %v98 = vld [vmem:[#allocation5 + $0x190] sm:$0xff]
    %v99 = vld [vmem:[#allocation5 + $0x198] sm:$0xff]
    %v100 = vld [vmem:[#allocation5 + $0x1a0] sm:$0xff]
    %v101 = vld [vmem:[#allocation5 + $0x1a8] sm:$0xff]
    %v102 = vld [vmem:[#allocation5 + $0x1b0] sm:$0xff]
    %v103 = vld [vmem:[#allocation5 + $0x1b8] sm:$0xff]
    %v104 = vld [vmem:[#allocation5 + $0x1c0] sm:$0xff]
    %v105 = vld [vmem:[#allocation5 + $0x1c8] sm:$0xff]
    %v106 = vld [vmem:[#allocation5 + $0x1d0] sm:$0xff]
    %v107 = vld [vmem:[#allocation5 + $0x1d8] sm:$0xff]
    %v108 = vld [vmem:[#allocation5 + $0x1e0] sm:$0xff]
    %v109 = vld [vmem:[#allocation5 + $0x1e8] sm:$0xff]
    %v110 = vld [vmem:[#allocation5 + $0x1f0] sm:$0xff]
    %v111 = vld [vmem:[#allocation5 + $0x1f8] sm:$0xff]
    %112 = vmatprep.subr.mxu0 %v79
    %113 = vmatpush1.msra.mxu0 %v78
    %114 = vmatprep.subr.mxu0 %v77
    %115 = vmatpush1.msra.mxu0 %v76
    %116 = vmatprep.subr.mxu0 %v75
    %117 = vmatpush1.msra.mxu0 %v74
    %118 = vmatprep.subr.mxu0 %v73
    %119 = vmatpush1.msra.mxu0 %v72
    %120 = vmatprep.subr.mxu0 %v71
    %121 = vmatpush1.msra.mxu0 %v70
    %122 = vmatprep.subr.mxu0 %v69
    %123 = vmatpush1.msra.mxu0 %v68
    %124 = vmatprep.subr.mxu0 %v67
    %125 = vmatpush1.msra.mxu0 %v66
    %126 = vmatprep.subr.mxu0 %v65
    %127 = vmatpush1.msra.mxu0 %v64
    %128 = vmatprep.subr.mxu0 %v63
    %129 = vmatpush1.msra.mxu0 %v62
    %130 = vmatprep.subr.mxu0 %v61
    %131 = vmatpush1.msra.mxu0 %v60
    %132 = vmatprep.subr.mxu0 %v59
    %133 = vmatpush1.msra.mxu0 %v58
    %134 = vmatprep.subr.mxu0 %v57
    %135 = vmatpush1.msra.mxu0 %v56
    %136 = vmatprep.subr.mxu0 %v55
    %137 = vmatpush1.msra.mxu0 %v54
    %138 = vmatprep.subr.mxu0 %v53
    %139 = vmatpush1.msra.mxu0 %v52
    %140 = vmatprep.subr.mxu0 %v51
    %141 = vmatpush1.msra.mxu0 %v50
    %142 = vmatprep.subr.mxu0 %v49
    %143 = vmatpush1.msra.mxu0 %v48
    %144 = vmatprep.subr.mxu0 %v111
    %145 = vmatpush2.msra.mxu0 %v110
    %146 = vmatprep.subr.mxu0 %v109
    %147 = vmatpush2.msra.mxu0 %v108
    %148 = vmatprep.subr.mxu0 %v107
    %149 = vmatpush2.msra.mxu0 %v106
    %150 = vmatprep.subr.mxu0 %v105
    %151 = vmatpush2.msra.mxu0 %v104
    %152 = vmatprep.subr.mxu0 %v103
    %153 = vmatpush2.msra.mxu0 %v102
    %154 = vmatprep.subr.mxu0 %v101
    %155 = vmatpush2.msra.mxu0 %v100
    %156 = vmatprep.subr.mxu0 %v99
    %157 = vmatpush2.msra.mxu0 %v98
    %158 = vmatprep.subr.mxu0 %v97
    %159 = vmatpush2.msra.mxu0 %v96
    %160 = vmatprep.subr.mxu0 %v95
    %161 = vmatpush2.msra.mxu0 %v94
    %162 = vmatprep.subr.mxu0 %v93
    %163 = vmatpush2.msra.mxu0 %v92
    %164 = vmatprep.subr.mxu0 %v91
    %165 = vmatpush2.msra.mxu0 %v90
    %166 = vmatprep.subr.mxu0 %v89
    %167 = vmatpush2.msra.mxu0 %v88
    %168 = vmatprep.subr.mxu0 %v87
    %169 = vmatpush2.msra.mxu0 %v86
    %170 = vmatprep.subr.mxu0 %v85
    %171 = vmatpush2.msra.mxu0 %v84
    %172 = vmatprep.subr.mxu0 %v83
    %173 = vmatpush2.msra.mxu0 %v82
    %174 = vmatprep.subr.mxu0 %v81
    %175 = vmatpush2.msra.mxu0 %v80
    %176 = vmatprep.mubr.f32.mxu0 %v41
    %177 = vmatmul.mubr.f32.gmra.mxu0 %v40
    %v178 = vpop.f32.mrf.mxu0
    %v179 = vadd.f32 0.0, %v178
    %v180 = vpop.f32.mrf.mxu0
    %v181 = vadd.f32 0.0, %v180
    %182 = vmatprep.mubr.f32.mxu0 %v43
    %183 = vmatmul.mubr.f32.gmra.mxu0 %v42
    %v184 = vpop.f32.mrf.mxu0
    %v185 = vadd.f32 0.0, %v184
    %v186 = vpop.f32.mrf.mxu0
    %v187 = vadd.f32 0.0, %v186
    %188 = vmatprep.mubr.f32.mxu0 %v45
    %189 = vmatmul.mubr.f32.gmra.mxu0 %v44
    %v190 = vpop.f32.mrf.mxu0
    %v191 = vadd.f32 0.0, %v190
    %v192 = vpop.f32.mrf.mxu0
    %v193 = vadd.f32 0.0, %v192
    %194 = vmatprep.mubr.f32.mxu0 %v47
    %195 = vmatmul.mubr.f32.gmra.mxu0 %v46
    %v196 = vpop.f32.mrf.mxu0
    %v197 = vadd.f32 0.0, %v196
    %v198 = vpop.f32.mrf.mxu0
    %v199 = vadd.f32 0.0, %v198
    %200 = vdwg.mxu0
    %201 = vst [vmem:[#allocation7] sm:$0xff] %v179
    %202 = vst [vmem:[#allocation7 + $0x8] sm:$0xff] %v181
    %203 = vst [vmem:[#allocation7 + $0x10] sm:$0xff] %v185
    %204 = vst [vmem:[#allocation7 + $0x18] sm:$0xff] %v187
    %205 = vst [vmem:[#allocation7 + $0x20] sm:$0xff] %v191
    %206 = vst [vmem:[#allocation7 + $0x28] sm:$0xff] %v193
    %207 = vst [vmem:[#allocation7 + $0x30] sm:$0xff] %v197
    %208 = vst [vmem:[#allocation7 + $0x38] sm:$0xff] %v199
    // Predicated region
    $region18: #{tpu_custom_call.1} parent=1 // pred_check
      _
    $region19: #{tpu_custom_call.1} parent=1 // pred_check_branch
      %210 = sbr.rel (0) target = $region21
    $region20: #{tpu_custom_call.1} parent=1 // pred_region
      %s212 = ssub.s32 1024, 1024
      %213 = vsyncadd [#allocation4], %s212
      %s214 = sshll.u32 [#allocation7], 4
      %s215 = int_to_ptr.vmem [resolvable:$true] %s214
      %220 = dma.vmem_to_hbm [thread:$0]  %s215, 1024, %s2, [#allocation4], 256, 256, 16
    $region21: #{tpu_custom_call.1} parent=1 // pred_fallthru
      _
    // Predicated region
    $region22: #{tpu_custom_call.1} parent=1 // pred_check
      _
    $region23: #{tpu_custom_call.1} parent=1 // pred_check_branch
      %222 = sbr.rel (0) target = $region25
    $region24: #{tpu_custom_call.1} parent=1 // pred_region
      %223 = dma.done [#allocation4], 1024
    $region25: #{tpu_custom_call.1} parent=1 // pred_fallthru
      _
    %224 = vsyncpa [#allocation3], 1
    %225 = vsyncpa [#allocation6], 1
    %226 = vsyncpa [#allocation4], 1

</llo_original>
